<compile_context>
chip_gen: v7x
topology: tpu7x:2x2x1
jax: 0.10.0
libtpu: 0.0.40
codegen_flags: <defaults>
</compile_context>

<pallas_src>
import functools

import jax
import jax.numpy as jnp
from jax import lax
from jax.experimental import pallas as pl
from jax.experimental.pallas import tpu as pltpu


def _mlp_kernel(x_ref, w1_ref, b1_ref, w2_ref, b2_ref, w3_ref, b3_ref, o_ref):
    # x block arrives batch-major (tile_b, 13) f32; cast to bf16 in VMEM (VPU).
    xb = x_ref[...].astype(jnp.bfloat16)                            # (tb, 13)

    # Layer 1: contract the shared 13-axis (A @ B^T form) -> (64, tb),
    # batch on the lane axis; MXU with f32 accumulation.
    h1 = lax.dot_general(
        w1_ref[...], xb,
        dimension_numbers=(((1,), (1,)), ((), ())),
        preferred_element_type=jnp.float32)                         # (64, tb) f32
    h1 = jnp.maximum(h1 + b1_ref[...], 0.0).astype(jnp.bfloat16)
    # Dropout(0.3) -> identity in eval mode

    # Layer 2: (32,64) bf16 @ (64,tb) bf16 -> (32,tb) f32 (MXU, f32 acc)
    h2 = jnp.dot(w2_ref[...], h1, preferred_element_type=jnp.float32)
    h2 = jnp.maximum(h2 + b2_ref[...], 0.0)
    # Dropout(0.3) -> identity in eval mode

    # Layer 3 (32 -> 1): VPU multiply + sublane reduce (XLU) instead of an
    # N=1 matmul; sigmoid on the EUP.
    logits = jnp.sum(h2 * w3_ref[...], axis=0, keepdims=True) + b3_ref[...]
    o_ref[...] = jax.nn.sigmoid(logits).astype(o_ref.dtype)         # (1, tb)


def _pick_tile(batch, max_tile):
    """Lane tile (multiple of 128): large enough to amortize the ~0.35 us
    per-step overhead, small enough that big batches still produce >= 2
    'parallel' grid steps (megacore sharding on v7x)."""
    per_core = pl.cdiv(batch, 2)
    tile = 128 * pl.cdiv(per_core, 128)
    return max(128, min(tile, max_tile))


@functools.partial(jax.jit, static_argnames=("max_tile",))
def heart_attack_classifier(x, params, *, max_tile=8192):
    """x: (B, 13) float32. params: dict of w1,b1,w2,b2,w3,b3. Returns (B, 1)."""
    B, F = x.shape
    assert F == 13
    tile_b = _pick_tile(B, max_tile)
    num_tiles = pl.cdiv(B, tile_b)

    # Weights in "output-major" layout for the batch-on-lanes formulation.
    w1t = params["w1"].T.astype(jnp.bfloat16)                       # (64, 13) bf16
    b1c = params["b1"].reshape(64, 1)                               # (64, 1)  f32
    w2t = params["w2"].T.astype(jnp.bfloat16)                       # (32, 64) bf16
    b2c = params["b2"].reshape(32, 1)                               # (32, 1)  f32
    w3c = params["w3"].reshape(32, 1)                               # (32, 1)  f32
    b3c = params["b3"].reshape(1, 1)                                # (1, 1)   f32

    def _const(shape):  # tiny weights: constant block index -> VMEM-resident
        return pl.BlockSpec(shape, lambda i: (0, 0))

    out = pl.pallas_call(
        _mlp_kernel,
        out_shape=jax.ShapeDtypeStruct((1, B), jnp.float32),
        grid_spec=pl.GridSpec(
            grid=(num_tiles,),
            in_specs=[
                # x streamed straight from HBM; ragged last block is handled
                # by Pallas (OOB rows only pollute lanes we never write back).
                pl.BlockSpec((tile_b, 13), lambda i: (i, 0)),
                _const(w1t.shape), _const(b1c.shape),
                _const(w2t.shape), _const(b2c.shape),
                _const(w3c.shape), _const(b3c.shape),
            ],
            out_specs=pl.BlockSpec((1, tile_b), lambda i: (0, i)),  # lane-dense
        ),
        compiler_params=pltpu.CompilerParams(
            dimension_semantics=("parallel",)),
    )(x, w1t, b1c, w2t, b2c, w3c, b3c)

    # (1, B) lane-dense result -> (B, 1), matching the PyTorch module.
    return out.reshape(B, 1)


def init_params(key):
    """Deterministic synthetic parameters matching nn.Linear shapes.

    PyTorch stores Linear weights as (out, in); we store (in, out) and the
    wrapper transposes to the layout the kernel wants.
    """
    ks = jax.random.split(key, 6)

    def u(k, shape, fan_in):
        bound = 1.0 / jnp.sqrt(fan_in)
        return jax.random.uniform(k, shape, jnp.float32, -bound, bound)

    return {
        "w1": u(ks[0], (13, 64), 13.0),
        "b1": u(ks[1], (1, 64), 13.0),
        "w2": u(ks[2], (64, 32), 64.0),
        "b2": u(ks[3], (1, 32), 64.0),
        "w3": u(ks[4], (32, 1), 32.0),
        "b3": u(ks[5], (1, 1), 32.0),
    }


if __name__ == "__main__":
    key = jax.random.PRNGKey(0)
    k_x, k_p = jax.random.split(key)

    B = 300  # ragged (not a multiple of 128) and spans 2 parallel grid steps
    x = jax.random.normal(k_x, (B, 13), dtype=jnp.float32)
    params = init_params(k_p)

    out = heart_attack_classifier(x, params)
    out = jax.block_until_ready(out)
    assert out.shape == (B, 1)

    # Reference in plain JAX (dropout = identity), mirroring the kernel's
    # bf16 casts on layers 1 and 2 (f32 accumulation everywhere).
    xb = x.astype(jnp.bfloat16)
    w1b = params["w1"].astype(jnp.bfloat16)
    h1 = jnp.maximum(
        jnp.dot(xb, w1b, preferred_element_type=jnp.float32) + params["b1"], 0.0)
    h1b = h1.astype(jnp.bfloat16)
    w2b = params["w2"].astype(jnp.bfloat16)
    h2 = jnp.maximum(
        jnp.dot(h1b, w2b, preferred_element_type=jnp.float32) + params["b2"], 0.0)
    ref = jax.nn.sigmoid(h2 @ params["w3"] + params["b3"])

    assert jnp.allclose(out, ref, atol=2e-3), "mismatch vs reference"
    print("KERNEL_OK")
</pallas_src>

<mosaic_0001>
module attributes {stable_mosaic.version = 11 : i64} {
  func.func @_mlp_kernel(%arg0: i32, %arg1: memref<256x13xf32, #tpu.memory_space<vmem>>, %arg2: memref<64x13xbf16, #tpu.memory_space<vmem>>, %arg3: memref<64x1xf32, #tpu.memory_space<vmem>>, %arg4: memref<32x64xbf16, #tpu.memory_space<vmem>>, %arg5: memref<32x1xf32, #tpu.memory_space<vmem>>, %arg6: memref<32x1xf32, #tpu.memory_space<vmem>>, %arg7: memref<1x1xf32, #tpu.memory_space<vmem>>, %arg8: memref<1x256xf32, #tpu.memory_space<vmem>>) attributes {dimension_semantics = [#tpu.dimension_semantics<parallel>], iteration_bounds = array<i64: 2>, scalar_prefetch = 0 : i64, scratch_operands = 0 : i64, tpu.core_type = #tpu.core_type<tc>, window_params = [{transform_indices = @transform_0, window_bounds = array<i64: 256, 13>}, {pipeline_mode = #tpu.pipeline_mode<synchronous>, transform_indices = @transform_1, window_bounds = array<i64: 64, 13>}, {pipeline_mode = #tpu.pipeline_mode<synchronous>, transform_indices = @transform_2, window_bounds = array<i64: 64, 1>}, {pipeline_mode = #tpu.pipeline_mode<synchronous>, transform_indices = @transform_3, window_bounds = array<i64: 32, 64>}, {pipeline_mode = #tpu.pipeline_mode<synchronous>, transform_indices = @transform_4, window_bounds = array<i64: 32, 1>}, {pipeline_mode = #tpu.pipeline_mode<synchronous>, transform_indices = @transform_5, window_bounds = array<i64: 32, 1>}, {pipeline_mode = #tpu.pipeline_mode<synchronous>, transform_indices = @transform_6, window_bounds = array<i64: 1, 1>}, {transform_indices = @transform_7, window_bounds = array<i64: 1, 256>}]} {
    %c0 = arith.constant 0 : index
    %c0_0 = arith.constant 0 : index
    %0 = vector.load %arg1[%c0, %c0_0] : memref<256x13xf32, #tpu.memory_space<vmem>>, vector<256x13xf32>
    %1 = arith.truncf %0 : vector<256x13xf32> to vector<256x13xbf16>
    %c0_1 = arith.constant 0 : index
    %c0_2 = arith.constant 0 : index
    %2 = vector.load %arg2[%c0_1, %c0_2] : memref<64x13xbf16, #tpu.memory_space<vmem>>, vector<64x13xbf16>
    %cst = arith.constant dense<0.000000e+00> : vector<64x256xf32>
    %3 = tpu.matmul %2, %1, %cst {dimension_numbers = #tpu.dot_dimension_numbers<[1], [1], [0], [0], [0, 0, 1, 0], [], []>} : vector<64x13xbf16>, vector<256x13xbf16>, vector<64x256xf32> -> vector<64x256xf32>
    %c0_3 = arith.constant 0 : index
    %c0_4 = arith.constant 0 : index
    %4 = vector.load %arg3[%c0_3, %c0_4] : memref<64x1xf32, #tpu.memory_space<vmem>>, vector<64x1xf32>
    %5 = vector.broadcast %4 : vector<64x1xf32> to vector<64x256xf32>
    %6 = arith.addf %3, %5 : vector<64x256xf32>
    %cst_5 = arith.constant 0.000000e+00 : f32
    %7 = vector.broadcast %cst_5 : f32 to vector<64x256xf32>
    %8 = arith.maximumf %6, %7 : vector<64x256xf32>
    %9 = arith.truncf %8 : vector<64x256xf32> to vector<64x256xbf16>
    %c0_6 = arith.constant 0 : index
    %c0_7 = arith.constant 0 : index
    %10 = vector.load %arg4[%c0_6, %c0_7] : memref<32x64xbf16, #tpu.memory_space<vmem>>, vector<32x64xbf16>
    %cst_8 = arith.constant dense<0.000000e+00> : vector<32x256xf32>
    %11 = tpu.matmul %10, %9, %cst_8 {dimension_numbers = #tpu.dot_dimension_numbers<[1], [0], [0], [1], [0, 0, 1, 1], [], []>} : vector<32x64xbf16>, vector<64x256xbf16>, vector<32x256xf32> -> vector<32x256xf32>
    %c0_9 = arith.constant 0 : index
    %c0_10 = arith.constant 0 : index
    %12 = vector.load %arg5[%c0_9, %c0_10] : memref<32x1xf32, #tpu.memory_space<vmem>>, vector<32x1xf32>
    %13 = vector.broadcast %12 : vector<32x1xf32> to vector<32x256xf32>
    %14 = arith.addf %11, %13 : vector<32x256xf32>
    %cst_11 = arith.constant 0.000000e+00 : f32
    %15 = vector.broadcast %cst_11 : f32 to vector<32x256xf32>
    %16 = arith.maximumf %14, %15 : vector<32x256xf32>
    %c0_12 = arith.constant 0 : index
    %c0_13 = arith.constant 0 : index
    %17 = vector.load %arg6[%c0_12, %c0_13] : memref<32x1xf32, #tpu.memory_space<vmem>>, vector<32x1xf32>
    %18 = vector.broadcast %17 : vector<32x1xf32> to vector<32x256xf32>
    %19 = arith.mulf %16, %18 : vector<32x256xf32>
    %cst_14 = arith.constant dense<0.000000e+00> : vector<256xf32>
    %20 = vector.multi_reduction <add>, %19, %cst_14 [0] : vector<32x256xf32> to vector<256xf32>
    %21 = vector.shape_cast %20 : vector<256xf32> to vector<1x256xf32>
    %c0_15 = arith.constant 0 : index
    %c0_16 = arith.constant 0 : index
    %22 = vector.load %arg7[%c0_15, %c0_16] : memref<1x1xf32, #tpu.memory_space<vmem>>, vector<1x1xf32>
    %23 = vector.broadcast %22 : vector<1x1xf32> to vector<1x256xf32>
    %24 = arith.addf %21, %23 : vector<1x256xf32>
    %25 = arith.negf %24 : vector<1x256xf32>
    %26 = math.exp %25 : vector<1x256xf32>
    %cst_17 = arith.constant 1.000000e+00 : f32
    %27 = vector.broadcast %cst_17 : f32 to vector<1x256xf32>
    %28 = arith.addf %27, %26 : vector<1x256xf32>
    %29 = arith.divf %27, %28 : vector<1x256xf32>
    %c0_18 = arith.constant 0 : index
    %c0_19 = arith.constant 0 : index
    %30 = vector.load %arg8[%c0_18, %c0_19] : memref<1x256xf32, #tpu.memory_space<vmem>>, vector<1x256xf32>
    tpu.vector_store %arg8[%c0_18, %c0_19], %29 {strides = array<i32>} : memref<1x256xf32, #tpu.memory_space<vmem>>, vector<1x256xf32>,
    return
  }
  func.func @transform_0(%arg0: i32) -> (i32, i32) {
    %c0_i32 = arith.constant 0 : i32
    %c0_i32_0 = arith.constant 0 : i32
    return %arg0, %c0_i32 : i32, i32
  }
  func.func @transform_1(%arg0: i32) -> (i32, i32) {
    %c0_i32 = arith.constant 0 : i32
    %c0_i32_0 = arith.constant 0 : i32
    %c0_i32_1 = arith.constant 0 : i32
    return %c0_i32, %c0_i32_0 : i32, i32
  }
  func.func @transform_2(%arg0: i32) -> (i32, i32) {
    %c0_i32 = arith.constant 0 : i32
    %c0_i32_0 = arith.constant 0 : i32
    %c0_i32_1 = arith.constant 0 : i32
    return %c0_i32, %c0_i32_0 : i32, i32
  }
  func.func @transform_3(%arg0: i32) -> (i32, i32) {
    %c0_i32 = arith.constant 0 : i32
    %c0_i32_0 = arith.constant 0 : i32
    %c0_i32_1 = arith.constant 0 : i32
    return %c0_i32, %c0_i32_0 : i32, i32
  }
  func.func @transform_4(%arg0: i32) -> (i32, i32) {
    %c0_i32 = arith.constant 0 : i32
    %c0_i32_0 = arith.constant 0 : i32
    %c0_i32_1 = arith.constant 0 : i32
    return %c0_i32, %c0_i32_0 : i32, i32
  }
  func.func @transform_5(%arg0: i32) -> (i32, i32) {
    %c0_i32 = arith.constant 0 : i32
    %c0_i32_0 = arith.constant 0 : i32
    %c0_i32_1 = arith.constant 0 : i32
    return %c0_i32, %c0_i32_0 : i32, i32
  }
  func.func @transform_6(%arg0: i32) -> (i32, i32) {
    %c0_i32 = arith.constant 0 : i32
    %c0_i32_0 = arith.constant 0 : i32
    %c0_i32_1 = arith.constant 0 : i32
    return %c0_i32, %c0_i32_0 : i32, i32
  }
  func.func @transform_7(%arg0: i32) -> (i32, i32) {
    %c0_i32 = arith.constant 0 : i32
    %c0_i32_0 = arith.constant 0 : i32
    return %c0_i32, %arg0 : i32, i32
  }
}

</mosaic_0001>

<llo_original>
// kernel: heart_attack_classifier.1
$region0: #{heart_attack_classifier.1}
  #allocation0 [shape = 'u32[]', space=smem, size = 0x4, offset = 0x4, fixed_abs, tag = 'smem constant byte address 0x4 - core index']
  #allocation1 [shape = 'u32[144,128]{1,0:T(1,128)}', space=vmem, size = 0x12000, scoped, tag = 'internal scratch']
  #allocation2 [shape = 'f32[1,1]{1,0:T(1,128)S(1)}', space=vmem, size = 0x200, scoped, tag = 'scoped memory for heart_attack_classifier.1']
  %s0 = inlined_call_operand.vmem [shape: f32[300,13], index: 0, kind: input, shape index: {}]
  %s1 = inlined_call_operand.vmem [shape: bf16[64,13], index: 1, kind: input, shape index: {}]
  %s2 = inlined_call_operand.vmem [shape: f32[64,1], index: 2, kind: input, shape index: {}]
  %s3 = inlined_call_operand.vmem [shape: bf16[32,64], index: 3, kind: input, shape index: {}]
  %s4 = inlined_call_operand.vmem [shape: f32[32,1], index: 4, kind: input, shape index: {}]
  %s5 = inlined_call_operand.vmem [shape: f32[32,1], index: 5, kind: input, shape index: {}]
  %s6 = inlined_call_operand.<no memory space> [shape: f32[1,1], index: 6, kind: input, shape index: {}]
  %s7 = inlined_call_operand.hbm [shape: f32[1,300], index: 7, kind: output, shape index: {}]
  %s8 = sld [smem:[#allocation0]]
  $region61: #{heart_attack_classifier.1} parent=0
    _
  %s10 = ssub.s32 1, %s8
  %s11 = scalar_select 0, %s10, %s8
  %v12 = vstv %s6
  %13 = vst [vmem:[#allocation2] sm:$0x1] %v12
  $region1: #{heart_attack_classifier.1} parent=0
    #allocation3 [shape = 'u8[2048]{0}', space=vmem, size = 0x800, scoped, tag = 'output window, operand 0']
    #allocation4 [shape = 's32[2]{0}', space=sflag, size = 0x8, scoped, tag = 'scoped memory for heart_attack_classifier.1']
    %14 = vsyncpa [#allocation4], 0
    %s15 = scalar_lea.sflag [#allocation4], 1
    %16 = vsyncpa %s15, 0
    loop: start=0, step=1, limit=4
    $region2: #{heart_attack_classifier.1} parent=1 // loop_pre_header
      _
    $region3: #{heart_attack_classifier.1} parent=1 // loop_header
      %s18 = sphi 0, %s22
      %p19 = scmp.ge.s32.totalorder %s18, 4
      %s28 = sphi 0, %s30
      %s31 = sphi 0, %s28
      %s32 = sphi 0, %s31
      %s48 = sphi 0, %s32
      %s52 = sphi 0, %s52
      %s54 = sphi 0, %s52
      %s55 = sphi 0, %s54
      %s69 = sphi 0, %s55
      %s73 = sphi 0, %s73
      %s75 = sphi 0, %s73
      %s76 = sphi 0, %s75
      %s90 = sphi 0, %s76
      %s94 = sphi 0, %s94
      %s96 = sphi 0, %s94
      %s97 = sphi 0, %s96
      %s111 = sphi 0, %s97
      %s115 = sphi 0, %s115
      %s117 = sphi 0, %s115
      %s118 = sphi 0, %s117
      %s132 = sphi 0, %s118
      %s136 = sphi 0, %s136
      %s138 = sphi 0, %s136
      %s139 = sphi 0, %s138
      %s153 = sphi 0, %s139
      %s157 = sphi 0, %s157
      %s159 = sphi 0, %s157
      %s160 = sphi 0, %s159
      %s174 = sphi 0, %s160
      %s180 = sphi 0, %s182
      %s183 = sphi 0, %s180
      %s184 = sphi 0, %s183
      %s200 = sphi 0, %s184
    $region4: #{heart_attack_classifier.1} parent=1 // loop_header_branch
      %21 = sbr.rel (%p19) target = $region8
    $region5: #{heart_attack_classifier.1} parent=1 // loop_body
      %s23 = ssub.s32 %s18, 1
      %s24 = ssub.s32 %s18, 2
      %s25 = sadd.s32 %s18, 1
      %s26 = ssub.s32 %s18, %s25
      %p27 = scmp.eq.s32.totalorder %s26, 0
      %s29 = sadd.s32 %s28, 1
      %s30 = scalar_select %p27, %s28, %s29
      %p33 = pneg %p27
      %p34 = scmp.eq.s32.totalorder %s18, 1
      %p35 = por %p33, %p34
      %p36 = scmp.ne.s32.totalorder %s28, %s31
      %p37 = scmp.eq.s32.totalorder %s18, 0
      %p38 = por %p36, %p37
      %p39 = scmp.ne.s32.totalorder %s28, %s31
      %p40 = scmp.eq.s32.totalorder %s23, 1
      %p41 = por %p39, %p40
      %p42 = scmp.ne.s32.totalorder %s31, %s32
      %p43 = scmp.eq.s32.totalorder %s23, 0
      %p44 = por %p42, %p43
      %p45 = scmp.ne.s32.totalorder %s31, %s32
      %p46 = scmp.eq.s32.totalorder %s24, 1
      %p47 = por %p45, %p46
      %p49 = scmp.ne.s32.totalorder %s32, %s48
      %p50 = scmp.eq.s32.totalorder %s24, 0
      %p51 = por %p49, %p50
      %s53 = sadd.s32 %s52, 1
      %p56 = scmp.eq.s32.totalorder %s18, 1
      %p57 = scmp.ne.s32.totalorder %s52, %s54
      %p58 = scmp.eq.s32.totalorder %s18, 0
      %p59 = por %p57, %p58
      %p60 = scmp.ne.s32.totalorder %s52, %s54
      %p61 = scmp.eq.s32.totalorder %s23, 1
      %p62 = por %p60, %p61
      %p63 = scmp.ne.s32.totalorder %s54, %s55
      %p64 = scmp.eq.s32.totalorder %s23, 0
      %p65 = por %p63, %p64
      %p66 = scmp.ne.s32.totalorder %s54, %s55
      %p67 = scmp.eq.s32.totalorder %s24, 1
      %p68 = por %p66, %p67
      %p70 = scmp.ne.s32.totalorder %s55, %s69
      %p71 = scmp.eq.s32.totalorder %s24, 0
      %p72 = por %p70, %p71
      %s74 = sadd.s32 %s73, 1
      %p77 = scmp.eq.s32.totalorder %s18, 1
      %p78 = scmp.ne.s32.totalorder %s73, %s75
      %p79 = scmp.eq.s32.totalorder %s18, 0
      %p80 = por %p78, %p79
      %p81 = scmp.ne.s32.totalorder %s73, %s75
      %p82 = scmp.eq.s32.totalorder %s23, 1
      %p83 = por %p81, %p82
      %p84 = scmp.ne.s32.totalorder %s75, %s76
      %p85 = scmp.eq.s32.totalorder %s23, 0
      %p86 = por %p84, %p85
      %p87 = scmp.ne.s32.totalorder %s75, %s76
      %p88 = scmp.eq.s32.totalorder %s24, 1
      %p89 = por %p87, %p88
      %p91 = scmp.ne.s32.totalorder %s76, %s90
      %p92 = scmp.eq.s32.totalorder %s24, 0
      %p93 = por %p91, %p92
      %s95 = sadd.s32 %s94, 1
      %p98 = scmp.eq.s32.totalorder %s18, 1
      %p99 = scmp.ne.s32.totalorder %s94, %s96
      %p100 = scmp.eq.s32.totalorder %s18, 0
      %p101 = por %p99, %p100
      %p102 = scmp.ne.s32.totalorder %s94, %s96
      %p103 = scmp.eq.s32.totalorder %s23, 1
      %p104 = por %p102, %p103
      %p105 = scmp.ne.s32.totalorder %s96, %s97
      %p106 = scmp.eq.s32.totalorder %s23, 0
      %p107 = por %p105, %p106
      %p108 = scmp.ne.s32.totalorder %s96, %s97
      %p109 = scmp.eq.s32.totalorder %s24, 1
      %p110 = por %p108, %p109
      %p112 = scmp.ne.s32.totalorder %s97, %s111
      %p113 = scmp.eq.s32.totalorder %s24, 0
      %p114 = por %p112, %p113
      %s116 = sadd.s32 %s115, 1
      %p119 = scmp.eq.s32.totalorder %s18, 1
      %p120 = scmp.ne.s32.totalorder %s115, %s117
      %p121 = scmp.eq.s32.totalorder %s18, 0
      %p122 = por %p120, %p121
      %p123 = scmp.ne.s32.totalorder %s115, %s117
      %p124 = scmp.eq.s32.totalorder %s23, 1
      %p125 = por %p123, %p124
      %p126 = scmp.ne.s32.totalorder %s117, %s118
      %p127 = scmp.eq.s32.totalorder %s23, 0
      %p128 = por %p126, %p127
      %p129 = scmp.ne.s32.totalorder %s117, %s118
      %p130 = scmp.eq.s32.totalorder %s24, 1
      %p131 = por %p129, %p130
      %p133 = scmp.ne.s32.totalorder %s118, %s132
      %p134 = scmp.eq.s32.totalorder %s24, 0
      %p135 = por %p133, %p134
      %s137 = sadd.s32 %s136, 1
      %p140 = scmp.eq.s32.totalorder %s18, 1
      %p141 = scmp.ne.s32.totalorder %s136, %s138
      %p142 = scmp.eq.s32.totalorder %s18, 0
      %p143 = por %p141, %p142
      %p144 = scmp.ne.s32.totalorder %s136, %s138
      %p145 = scmp.eq.s32.totalorder %s23, 1
      %p146 = por %p144, %p145
      %p147 = scmp.ne.s32.totalorder %s138, %s139
      %p148 = scmp.eq.s32.totalorder %s23, 0
      %p149 = por %p147, %p148
      %p150 = scmp.ne.s32.totalorder %s138, %s139
      %p151 = scmp.eq.s32.totalorder %s24, 1
      %p152 = por %p150, %p151
      %p154 = scmp.ne.s32.totalorder %s139, %s153
      %p155 = scmp.eq.s32.totalorder %s24, 0
      %p156 = por %p154, %p155
      %s158 = sadd.s32 %s157, 1
      %p161 = scmp.eq.s32.totalorder %s18, 1
      %p162 = scmp.ne.s32.totalorder %s157, %s159
      %p163 = scmp.eq.s32.totalorder %s18, 0
      %p164 = por %p162, %p163
      %p165 = scmp.ne.s32.totalorder %s157, %s159
      %p166 = scmp.eq.s32.totalorder %s23, 1
      %p167 = por %p165, %p166
      %p168 = scmp.ne.s32.totalorder %s159, %s160
      %p169 = scmp.eq.s32.totalorder %s23, 0
      %p170 = por %p168, %p169
      %p171 = scmp.ne.s32.totalorder %s159, %s160
      %p172 = scmp.eq.s32.totalorder %s24, 1
      %p173 = por %p171, %p172
      %p175 = scmp.ne.s32.totalorder %s160, %s174
      %p176 = scmp.eq.s32.totalorder %s24, 0
      %p177 = por %p175, %p176
      %s178 = ssub.s32 %s18, %s25
      %p179 = scmp.eq.s32.totalorder %s178, 0
      %s181 = sadd.s32 %s180, 1
      %s182 = scalar_select %p179, %s180, %s181
      %p185 = pneg %p179
      %p186 = scmp.eq.s32.totalorder %s18, 1
      %p187 = por %p185, %p186
      %p188 = scmp.ne.s32.totalorder %s180, %s183
      %p189 = scmp.eq.s32.totalorder %s18, 0
      %p190 = por %p188, %p189
      %p191 = scmp.ne.s32.totalorder %s180, %s183
      %p192 = scmp.eq.s32.totalorder %s23, 1
      %p193 = por %p191, %p192
      %p194 = scmp.ne.s32.totalorder %s183, %s184
      %p195 = scmp.eq.s32.totalorder %s23, 0
      %p196 = por %p194, %p195
      %p197 = scmp.ne.s32.totalorder %s183, %s184
      %p198 = scmp.eq.s32.totalorder %s24, 1
      %p199 = por %p197, %p198
      %p201 = scmp.ne.s32.totalorder %s184, %s200
      %p202 = scmp.eq.s32.totalorder %s24, 0
      %p203 = por %p201, %p202
      %p204 = scmp.le.s32.totalorder 1, %s18
      %p205 = scmp.lt.s32.totalorder %s18, 3
      %p206 = pnand %p204, %p205
      %p207 = pneg %p206
      // Predicated region
      $region9: #{heart_attack_classifier.1} parent=5 // pred_check
        _
      $region10: #{heart_attack_classifier.1} parent=5 // pred_check_branch
        %209 = sbr.rel (%p206) target = $region12
      $region11: #{heart_attack_classifier.1} parent=5 // pred_region
        %s210 = ssub.s32 %s18, 1
        // Predicated region
        $region13: #{heart_attack_classifier.1} parent=11 // pred_check
          %p211 = pneg %p65
        $region14: #{heart_attack_classifier.1} parent=11 // pred_check_branch
          %213 = sbr.rel (%p211) target = $region16
        $region15: #{heart_attack_classifier.1} parent=11 // pred_region
          _
        $region16: #{heart_attack_classifier.1} parent=11 // pred_fallthru
          _
        // Predicated region
        $region17: #{heart_attack_classifier.1} parent=11 // pred_check
          %p214 = pneg %p86
        $region18: #{heart_attack_classifier.1} parent=11 // pred_check_branch
          %216 = sbr.rel (%p214) target = $region20
        $region19: #{heart_attack_classifier.1} parent=11 // pred_region
          _
        $region20: #{heart_attack_classifier.1} parent=11 // pred_fallthru
          _
        // Predicated region
        $region21: #{heart_attack_classifier.1} parent=11 // pred_check
          %p217 = pneg %p107
        $region22: #{heart_attack_classifier.1} parent=11 // pred_check_branch
          %219 = sbr.rel (%p217) target = $region24
        $region23: #{heart_attack_classifier.1} parent=11 // pred_region
          _
        $region24: #{heart_attack_classifier.1} parent=11 // pred_fallthru
          _
        // Predicated region
        $region25: #{heart_attack_classifier.1} parent=11 // pred_check
          %p220 = pneg %p128
        $region26: #{heart_attack_classifier.1} parent=11 // pred_check_branch
          %222 = sbr.rel (%p220) target = $region28
        $region27: #{heart_attack_classifier.1} parent=11 // pred_region
          _
        $region28: #{heart_attack_classifier.1} parent=11 // pred_fallthru
          _
        // Predicated region
        $region29: #{heart_attack_classifier.1} parent=11 // pred_check
          %p223 = pneg %p149
        $region30: #{heart_attack_classifier.1} parent=11 // pred_check_branch
          %225 = sbr.rel (%p223) target = $region32
        $region31: #{heart_attack_classifier.1} parent=11 // pred_region
          _
        $region32: #{heart_attack_classifier.1} parent=11 // pred_fallthru
          _
        // Predicated region
        $region33: #{heart_attack_classifier.1} parent=11 // pred_check
          %p226 = pneg %p170
        $region34: #{heart_attack_classifier.1} parent=11 // pred_check_branch
          %228 = sbr.rel (%p226) target = $region36
        $region35: #{heart_attack_classifier.1} parent=11 // pred_region
          _
        $region36: #{heart_attack_classifier.1} parent=11 // pred_fallthru
          _
      $region12: #{heart_attack_classifier.1} parent=5 // pred_fallthru
        _
      %p229 = scmp.lt.s32.totalorder %s18, 2
      // Predicated region
      $region37: #{heart_attack_classifier.1} parent=5 // pred_check
        %p230 = pneg %p229
      $region38: #{heart_attack_classifier.1} parent=5 // pred_check_branch
        %232 = sbr.rel (%p230) target = $region40
      $region39: #{heart_attack_classifier.1} parent=5 // pred_region
        // Predicated region
        $region41: #{heart_attack_classifier.1} parent=39 // pred_check
          %p233 = pneg %p38
        $region42: #{heart_attack_classifier.1} parent=39 // pred_check_branch
          %235 = sbr.rel (%p233) target = $region44
        $region43: #{heart_attack_classifier.1} parent=39 // pred_region
          %s236 = smul.u32 32, %s18
          %s237 = ssub.s32 38, %s236
          %p238 = scmp.lt.s32.totalorder %s237, 32
          %s239 = scalar_select %p238, %s237, 32
          %s240 = smul.u32 128, %s239
          %p241 = scmp.lt.s32.totalorder %s236, 37
          %s242 = scalar_select %p241, %s236, 37
          %s243 = smul.addr %s242, 8
          %s244 = scalar_lea.vmem %s0, %s243
          %s245 = smul.u32 32, %s18
          %s246 = ssub.s32 38, %s245
          %p247 = scmp.lt.s32.totalorder %s246, 32
          %s248 = scalar_select %p247, %s246, 32
          %s249 = smul.u32 128, %s248
        $region44: #{heart_attack_classifier.1} parent=39 // pred_fallthru
          _
      $region40: #{heart_attack_classifier.1} parent=5 // pred_fallthru
        _
      %p250 = scmp.le.s32.totalorder 1, %s18
      %p251 = scmp.lt.s32.totalorder %s18, 3
      %p252 = pnand %p250, %p251
      %p253 = pneg %p252
      // Predicated region
      $region45: #{heart_attack_classifier.1} parent=5 // pred_check
        _
      $region46: #{heart_attack_classifier.1} parent=5 // pred_check_branch
        %255 = sbr.rel (%p252) target = $region48
      $region47: #{heart_attack_classifier.1} parent=5 // pred_region
        %s256 = ssub.s32 %s18, 1
        %s257 = smul.u32 32, %s23
        %s258 = ssub.s32 38, %s257
        %p259 = scmp.lt.s32.totalorder %s258, 32
        %s260 = scalar_select %p259, %s258, 32
        %s261 = smul.u32 128, %s260
        %p262 = scmp.lt.s32.totalorder %s257, 37
        %s263 = scalar_select %p262, %s257, 37
        %s264 = smul.addr %s263, 8
        %s265 = scalar_lea.vmem %s0, %s264
        %p266 = pneg %p44
        %p267 = pneg %p41
        %p268 = pneg %p65
        %p269 = pneg %p62
        %p270 = pneg %p86
        %p271 = pneg %p83
        %p272 = pneg %p107
        %p273 = pneg %p104
        %p274 = pneg %p128
        %p275 = pneg %p125
        %p276 = pneg %p149
        %p277 = pneg %p146
        %p278 = pneg %p170
        %p279 = pneg %p167
        %p280 = pneg %p196
        %p281 = pneg %p193
        %s282 = sand.u32 %s183, 1
        %s283 = scalar_lea.sflag [#allocation4], %s282
        %s284 = sand.u32 %s183, 1
        %s285 = smul.addr %s284, 2
        %s286 = scalar_lea.vmem [#allocation3], %s285
        %s287 = smul.u32 32, %s23
        %s288 = ssub.s32 38, %s287
        %p289 = scmp.lt.s32.totalorder %s288, 32
        %s290 = scalar_select %p289, %s288, 32
        %s291 = smul.u32 128, %s290
        %p292 = scmp.lt.s32.totalorder %s287, 37
        %s293 = scalar_select %p292, %s287, 37
        %s294 = smul.addr %s293, 8
        %s295 = scalar_lea.vmem %s0, %s294
        %s296 = smul.u32 32, %s23
        %s297 = ssub.s32 38, %s296
        %p298 = scmp.lt.s32.totalorder %s297, 32
        %s299 = scalar_select %p298, %s297, 32
        %s300 = smul.u32 128, %s299
        %s301 = smul.u32 2, %s23
        %s302 = ssub.s32 3, %s301
        %p303 = scmp.lt.s32.totalorder %s302, 2
        %s304 = scalar_select %p303, %s302, 2
        %s305 = smul.u32 16, %s304
        %v307 = vld [vmem:[%s295] sm:$0xff]
        %v308 = vld [vmem:[%s295 + $0x8] sm:$0xff]
        %v309 = vld [vmem:[%s295 + $0x10] sm:$0xff]
        %v310 = vld [vmem:[%s295 + $0x18] sm:$0xff]
        %v311 = vld [vmem:[%s295 + $0x20] sm:$0xff]
        %v312 = vld [vmem:[%s295 + $0x28] sm:$0xff]
        %v313 = vld [vmem:[%s295 + $0x30] sm:$0xff]
        %v314 = vld [vmem:[%s295 + $0x38] sm:$0xff]
        %v315 = vld [vmem:[%s295 + $0x40] sm:$0xff]
        %v316 = vld [vmem:[%s295 + $0x48] sm:$0xff]
        %v317 = vld [vmem:[%s295 + $0x50] sm:$0xff]
        %v318 = vld [vmem:[%s295 + $0x58] sm:$0xff]
        %v319 = vld [vmem:[%s295 + $0x60] sm:$0xff]
        %v320 = vld [vmem:[%s295 + $0x68] sm:$0xff]
        %v321 = vld [vmem:[%s295 + $0x70] sm:$0xff]
        %v322 = vld [vmem:[%s295 + $0x78] sm:$0xff]
        %v323 = vld [vmem:[%s295 + $0x80] sm:$0xff]
        %v324 = vld [vmem:[%s295 + $0x88] sm:$0xff]
        %v325 = vld [vmem:[%s295 + $0x90] sm:$0xff]
        %v326 = vld [vmem:[%s295 + $0x98] sm:$0xff]
        %v327 = vld [vmem:[%s295 + $0xa0] sm:$0xff]
        %v328 = vld [vmem:[%s295 + $0xa8] sm:$0xff]
        %v329 = vld [vmem:[%s295 + $0xb0] sm:$0xff]
        %v330 = vld [vmem:[%s295 + $0xb8] sm:$0xff]
        %v331 = vld [vmem:[%s295 + $0xc0] sm:$0xff]
        %v332 = vld [vmem:[%s295 + $0xc8] sm:$0xff]
        %v333 = vld [vmem:[%s295 + $0xd0] sm:$0xff]
        %v334 = vld [vmem:[%s295 + $0xd8] sm:$0xff]
        %v335 = vld [vmem:[%s295 + $0xe0] sm:$0xff]
        %v336 = vld [vmem:[%s295 + $0xe8] sm:$0xff]
        %v337 = vld [vmem:[%s295 + $0xf0] sm:$0xff]
        %v338 = vld [vmem:[%s295 + $0xf8] sm:$0xff]
        %v339 = vpack.c.bf16 %v308, %v307
        %v340 = vpack.c.bf16 %v310, %v309
        %v341 = vpack.c.bf16 %v312, %v311
        %v342 = vpack.c.bf16 %v314, %v313
        %v343 = vpack.c.bf16 %v316, %v315
        %v344 = vpack.c.bf16 %v318, %v317
        %v345 = vpack.c.bf16 %v320, %v319
        %v346 = vpack.c.bf16 %v322, %v321
        %v347 = vpack.c.bf16 %v324, %v323
        %v348 = vpack.c.bf16 %v326, %v325
        %v349 = vpack.c.bf16 %v328, %v327
        %v350 = vpack.c.bf16 %v330, %v329
        %v351 = vpack.c.bf16 %v332, %v331
        %v352 = vpack.c.bf16 %v334, %v333
        %v353 = vpack.c.bf16 %v336, %v335
        %v354 = vpack.c.bf16 %v338, %v337
        %v355 = vld [vmem:[%s1] sm:$0xf]
        %v356 = vld [vmem:[%s1 + $0x4] sm:$0xf]
        %v357 = vld [vmem:[%s1 + $0x8] sm:$0xf]
        %v358 = vld [vmem:[%s1 + $0xc] sm:$0xf]
        %v359 = vld [vmem:[%s1 + $0x10] sm:$0xf]
        %v360 = vld [vmem:[%s1 + $0x14] sm:$0xf]
        %v361 = vld [vmem:[%s1 + $0x18] sm:$0xf]
        %v362 = vld [vmem:[%s1 + $0x1c] sm:$0xf]
        %v363 = vld [vmem:[%s2] sm:$0xff]
        %v364 = vld [vmem:[%s2 + $0x8] sm:$0xff]
        %v365 = vld [vmem:[%s2 + $0x10] sm:$0xff]
        %v366 = vld [vmem:[%s2 + $0x18] sm:$0xff]
        %v367 = vld [vmem:[%s2 + $0x20] sm:$0xff]
        %v368 = vld [vmem:[%s2 + $0x28] sm:$0xff]
        %v369 = vld [vmem:[%s2 + $0x30] sm:$0xff]
        %v370 = vld [vmem:[%s2 + $0x38] sm:$0xff]
        %372 = vset.pattern.permute.xlu0 0
        %373 = vperm.xlu0 %372, %v363
        %v374 = vpop.permute.xlu0 %373
        %377 = vset.pattern.permute.xlu0 0
        %378 = vperm.xlu0 %377, %v364
        %v379 = vpop.permute.xlu0 %378
        %382 = vset.pattern.permute.xlu0 0
        %383 = vperm.xlu0 %382, %v365
        %v384 = vpop.permute.xlu0 %383
        %387 = vset.pattern.permute.xlu0 0
        %388 = vperm.xlu0 %387, %v366
        %v389 = vpop.permute.xlu0 %388
        %392 = vset.pattern.permute.xlu0 0
        %393 = vperm.xlu0 %392, %v367
        %v394 = vpop.permute.xlu0 %393
        %397 = vset.pattern.permute.xlu0 0
        %398 = vperm.xlu0 %397, %v368
        %v399 = vpop.permute.xlu0 %398
        %402 = vset.pattern.permute.xlu0 0
        %403 = vperm.xlu0 %402, %v369
        %v404 = vpop.permute.xlu0 %403
        %407 = vset.pattern.permute.xlu0 0
        %408 = vperm.xlu0 %407, %v370
        %v409 = vpop.permute.xlu0 %408
        %v419 = vunpack.c.l.b16 %v355
        %v420 = vunpack.c.l.b16 %v356
        %v421 = vunpack.c.l.b16 %v357
        %v422 = vunpack.c.l.b16 %v358
        %v423 = vunpack.c.l.b16 %v359
        %v424 = vunpack.c.l.b16 %v360
        %v425 = vunpack.c.l.b16 %v361
        %v426 = vunpack.c.l.b16 %v362
        %v427 = vpack.c.b16 %v420, %v419
        %v428 = vpack.c.b16 %v422, %v421
        %v429 = vpack.c.b16 %v424, %v423
        %v430 = vpack.c.b16 %v426, %v425
        %vm431 = vcmask 105472
        %v433 = vsel %vm431, %v427, 0
        %v436 = vsel %vm431, %v428, 0
        %v439 = vsel %vm431, %v429, 0
        %v442 = vsel %vm431, %v430, 0
        %v445 = vsel %vm431, %v339, 0
        %v448 = vsel %vm431, %v340, 0
        %v451 = vsel %vm431, %v341, 0
        %v454 = vsel %vm431, %v342, 0
        %v457 = vsel %vm431, %v343, 0
        %v460 = vsel %vm431, %v344, 0
        %v463 = vsel %vm431, %v345, 0
        %v466 = vsel %vm431, %v346, 0
        %v469 = vsel %vm431, %v347, 0
        %v472 = vsel %vm431, %v348, 0
        %v475 = vsel %vm431, %v349, 0
        %v478 = vsel %vm431, %v350, 0
        %v481 = vsel %vm431, %v351, 0
        %v484 = vsel %vm431, %v352, 0
        %v487 = vsel %vm431, %v353, 0
        %v490 = vsel %vm431, %v354, 0
        %492 = vmatprep.subr.bf16.mxu0 0
        %493 = vmatpush1.bf16.xpose.msra.mxu0 %v445
        %494 = vmatprep.subr.bf16.mxu0 0
        %495 = vmatpush1.bf16.xpose.msra.mxu0 %v448
        %496 = vmatprep.subr.bf16.mxu0 0
        %497 = vmatpush1.bf16.xpose.msra.mxu0 %v451
        %498 = vmatprep.subr.bf16.mxu0 0
        %499 = vmatpush1.bf16.xpose.msra.mxu0 %v454
        %500 = vmatprep.subr.bf16.mxu0 0
        %501 = vmatpush1.bf16.xpose.msra.mxu0 %v457
        %502 = vmatprep.subr.bf16.mxu0 0
        %503 = vmatpush1.bf16.xpose.msra.mxu0 %v460
        %504 = vmatprep.subr.bf16.mxu0 0
        %505 = vmatpush1.bf16.xpose.msra.mxu0 %v463
        %506 = vmatprep.subr.bf16.mxu0 0
        %507 = vmatpush1.bf16.xpose.msra.mxu0 %v466
        %508 = vmatprep.subr.bf16.mxu0 0
        %509 = vmatpush1.bf16.xpose.msra.mxu0 %v469
        %510 = vmatprep.subr.bf16.mxu0 0
        %511 = vmatpush1.bf16.xpose.msra.mxu0 %v472
        %512 = vmatprep.subr.bf16.mxu0 0
        %513 = vmatpush1.bf16.xpose.msra.mxu0 %v475
        %514 = vmatprep.subr.bf16.mxu0 0
        %515 = vmatpush1.bf16.xpose.msra.mxu0 %v478
        %516 = vmatprep.subr.bf16.mxu0 0
        %517 = vmatpush1.bf16.xpose.msra.mxu0 %v481
        %518 = vmatprep.subr.bf16.mxu0 0
        %519 = vmatpush1.bf16.xpose.msra.mxu0 %v484
        %520 = vmatprep.subr.bf16.mxu0 0
        %521 = vmatpush1.bf16.xpose.msra.mxu0 %v487
        %522 = vmatprep.subr.bf16.mxu0 0
        %523 = vmatpush1.bf16.xpose.msra.mxu0 %v490
        %524 = vmatprep.mubr.bf16.mxu0 0
        %525 = vmatmul.mubr.bf16.gmra.mrb[0].mxu0 %v433
        %v526 = vpop.f32.mrb[0].mxu0
        %v527 = vadd.f32 %v374, %v526
        %v528 = vpop.f32.mrb[0].mxu0
        %v529 = vadd.f32 %v374, %v528
        %v530 = vpop.f32.mrb[0].mxu0
        %v531 = vadd.f32 %v379, %v530
        %v532 = vpop.f32.mrb[0].mxu0
        %v533 = vadd.f32 %v379, %v532
        %534 = vmatprep.mubr.bf16.mxu0 0
        %535 = vmatmul.mubr.bf16.gmra.mrb[0].mxu0 %v436
        %v536 = vpop.f32.mrb[0].mxu0
        %v537 = vadd.f32 %v384, %v536
        %v538 = vpop.f32.mrb[0].mxu0
        %v539 = vadd.f32 %v384, %v538
        %v540 = vpop.f32.mrb[0].mxu0
        %v541 = vadd.f32 %v389, %v540
        %v542 = vpop.f32.mrb[0].mxu0
        %v543 = vadd.f32 %v389, %v542
        %544 = vmatprep.mubr.bf16.mxu0 0
        %545 = vmatmul.mubr.bf16.gmra.mrb[0].mxu0 %v439
        %v546 = vpop.f32.mrb[0].mxu0
        %v547 = vadd.f32 %v394, %v546
        %v548 = vpop.f32.mrb[0].mxu0
        %v549 = vadd.f32 %v394, %v548
        %v550 = vpop.f32.mrb[0].mxu0
        %v551 = vadd.f32 %v399, %v550
        %v552 = vpop.f32.mrb[0].mxu0
        %v553 = vadd.f32 %v399, %v552
        %554 = vmatprep.mubr.bf16.mxu0 0
        %555 = vmatmul.mubr.bf16.gmra.mrb[0].mxu0 %v442
        %v556 = vpop.f32.mrb[0].mxu0
        %v557 = vadd.f32 %v404, %v556
        %v558 = vpop.f32.mrb[0].mxu0
        %v559 = vadd.f32 %v404, %v558
        %v560 = vpop.f32.mrb[0].mxu0
        %v561 = vadd.f32 %v409, %v560
        %v562 = vpop.f32.mrb[0].mxu0
        %v563 = vadd.f32 %v409, %v562
        %564 = vdwg.mxu0
        %v565 = vmax.f32 %v527, 0.0
        %v566 = vmax.f32 %v529, 0.0
        %v567 = vmax.f32 %v531, 0.0
        %v568 = vmax.f32 %v533, 0.0
        %v569 = vmax.f32 %v537, 0.0
        %v570 = vmax.f32 %v539, 0.0
        %v571 = vmax.f32 %v541, 0.0
        %v572 = vmax.f32 %v543, 0.0
        %v573 = vmax.f32 %v547, 0.0
        %v574 = vmax.f32 %v549, 0.0
        %v575 = vmax.f32 %v551, 0.0
        %v576 = vmax.f32 %v553, 0.0
        %v577 = vmax.f32 %v557, 0.0
        %v578 = vmax.f32 %v559, 0.0
        %v579 = vmax.f32 %v561, 0.0
        %v580 = vmax.f32 %v563, 0.0
        %v581 = vpack.c.bf16 %v567, %v565
        %v582 = vpack.c.bf16 %v568, %v566
        %v583 = vpack.c.bf16 %v571, %v569
        %v584 = vpack.c.bf16 %v572, %v570
        %v585 = vpack.c.bf16 %v575, %v573
        %v586 = vpack.c.bf16 %v576, %v574
        %v587 = vpack.c.bf16 %v579, %v577
        %v588 = vpack.c.bf16 %v580, %v578
        %v589 = vld [vmem:[%s3] sm:$0xf]
        %v590 = vld [vmem:[%s3 + $0x4] sm:$0xf]
        %v591 = vld [vmem:[%s3 + $0x8] sm:$0xf]
        %v592 = vld [vmem:[%s3 + $0xc] sm:$0xf]
        %v593 = vld [vmem:[%s4] sm:$0xff]
        %v594 = vld [vmem:[%s4 + $0x8] sm:$0xff]
        %v595 = vld [vmem:[%s4 + $0x10] sm:$0xff]
        %v596 = vld [vmem:[%s4 + $0x18] sm:$0xff]
        %598 = vset.pattern.permute.xlu0 0
        %599 = vperm.xlu0 %598, %v593
        %v600 = vpop.permute.xlu0 %599
        %603 = vset.pattern.permute.xlu0 0
        %604 = vperm.xlu0 %603, %v594
        %v605 = vpop.permute.xlu0 %604
        %608 = vset.pattern.permute.xlu0 0
        %609 = vperm.xlu0 %608, %v595
        %v610 = vpop.permute.xlu0 %609
        %613 = vset.pattern.permute.xlu0 0
        %614 = vperm.xlu0 %613, %v596
        %v615 = vpop.permute.xlu0 %614
        %v621 = vunpack.c.l.b16 %v589
        %v622 = vunpack.c.l.b16 %v590
        %v623 = vunpack.c.l.b16 %v591
        %v624 = vunpack.c.l.b16 %v592
        %v625 = vpack.c.b16 %v622, %v621
        %v626 = vpack.c.b16 %v624, %v623
        %vm627 = vcmask 523264
        %v629 = vsel %vm627, %v625, 0
        %v632 = vsel %vm627, %v626, 0
        %634 = vmatprep.subr.bf16.mxu0 %v582
        %635 = vmatpush1.bf16.msra.mxu0 %v581
        %636 = vmatprep.subr.bf16.mxu0 %v584
        %637 = vmatpush1.bf16.msra.mxu0 %v583
        %638 = vmatprep.subr.bf16.mxu0 %v586
        %639 = vmatpush1.bf16.msra.mxu0 %v585
        %640 = vmatprep.subr.bf16.mxu0 %v588
        %641 = vmatpush1.bf16.msra.mxu0 %v587
        %642 = vmatprep.subr.bf16.mxu0 0
        %643 = vmatpush1.bf16.msra.mxu0 0
        %644 = vmatprep.subr.bf16.mxu0 0
        %645 = vmatpush1.bf16.msra.mxu0 0
        %646 = vmatprep.subr.bf16.mxu0 0
        %647 = vmatpush1.bf16.msra.mxu0 0
        %648 = vmatprep.subr.bf16.mxu0 0
        %649 = vmatpush1.bf16.msra.mxu0 0
        %650 = vmatprep.subr.bf16.mxu0 0
        %651 = vmatpush1.bf16.msra.mxu0 0
        %652 = vmatprep.subr.bf16.mxu0 0
        %653 = vmatpush1.bf16.msra.mxu0 0
        %654 = vmatprep.subr.bf16.mxu0 0
        %655 = vmatpush1.bf16.msra.mxu0 0
        %656 = vmatprep.subr.bf16.mxu0 0
        %657 = vmatpush1.bf16.msra.mxu0 0
        %658 = vmatprep.subr.bf16.mxu0 0
        %659 = vmatpush1.bf16.msra.mxu0 0
        %660 = vmatprep.subr.bf16.mxu0 0
        %661 = vmatpush1.bf16.msra.mxu0 0
        %662 = vmatprep.subr.bf16.mxu0 0
        %663 = vmatpush1.bf16.msra.mxu0 0
        %664 = vmatprep.subr.bf16.mxu0 0
        %665 = vmatpush1.bf16.msra.mxu0 0
        %666 = vmatprep.mubr.bf16.mxu0 0
        %667 = vmatmul.mubr.bf16.gmra.mrb[0].mxu0 %v629
        %v668 = vpop.f32.mrb[0].mxu0
        %v669 = vadd.f32 %v600, %v668
        %v670 = vpop.f32.mrb[0].mxu0
        %v671 = vadd.f32 %v600, %v670
        %v672 = vpop.f32.mrb[0].mxu0
        %v673 = vadd.f32 %v605, %v672
        %v674 = vpop.f32.mrb[0].mxu0
        %v675 = vadd.f32 %v605, %v674
        %676 = vmatprep.mubr.bf16.mxu0 0
        %677 = vmatmul.mubr.bf16.gmra.mrb[0].mxu0 %v632
        %v678 = vpop.f32.mrb[0].mxu0
        %v679 = vadd.f32 %v610, %v678
        %v680 = vpop.f32.mrb[0].mxu0
        %v681 = vadd.f32 %v610, %v680
        %v682 = vpop.f32.mrb[0].mxu0
        %v683 = vadd.f32 %v615, %v682
        %v684 = vpop.f32.mrb[0].mxu0
        %v685 = vadd.f32 %v615, %v684
        %686 = vdwg.mxu0
        %v687 = vmax.f32 %v669, 0.0
        %v688 = vmax.f32 %v671, 0.0
        %v689 = vmax.f32 %v673, 0.0
        %v690 = vmax.f32 %v675, 0.0
        %v691 = vmax.f32 %v679, 0.0
        %v692 = vmax.f32 %v681, 0.0
        %v693 = vmax.f32 %v683, 0.0
        %v694 = vmax.f32 %v685, 0.0
        %v695 = vld [vmem:[%s5] sm:$0xff]
        %v696 = vld [vmem:[%s5 + $0x8] sm:$0xff]
        %v697 = vld [vmem:[%s5 + $0x10] sm:$0xff]
        %v698 = vld [vmem:[%s5 + $0x18] sm:$0xff]
        %700 = vset.pattern.permute.xlu0 0
        %701 = vperm.xlu0 %700, %v695
        %v702 = vpop.permute.xlu0 %701
        %705 = vset.pattern.permute.xlu0 0
        %706 = vperm.xlu0 %705, %v696
        %v707 = vpop.permute.xlu0 %706
        %710 = vset.pattern.permute.xlu0 0
        %711 = vperm.xlu0 %710, %v697
        %v712 = vpop.permute.xlu0 %711
        %715 = vset.pattern.permute.xlu0 0
        %716 = vperm.xlu0 %715, %v698
        %v717 = vpop.permute.xlu0 %716
        %v719 = vmul.f32 %v687, %v702
        %v720 = vmul.f32 %v688, %v702
        %v721 = vmul.f32 %v689, %v707
        %v722 = vmul.f32 %v690, %v707
        %v723 = vmul.f32 %v691, %v712
        %v724 = vmul.f32 %v692, %v712
        %v725 = vmul.f32 %v693, %v717
        %v726 = vmul.f32 %v694, %v717
        %v727 = vadd.f32 %v719, %v721
        %v728 = vadd.f32 %v727, %v723
        %v729 = vadd.f32 %v728, %v725
        %v730 = vrot.slane %v729, 4
        %v731 = vadd.f32 %v729, %v730
        %v732 = vrot.slane %v731, 2
        %v733 = vadd.f32 %v731, %v732
        %v734 = vrot.slane %v733, 1
        %v735 = vadd.f32 %v733, %v734
        %v736 = vadd.f32 %v720, %v722
        %v737 = vadd.f32 %v736, %v724
        %v738 = vadd.f32 %v737, %v726
        %v739 = vrot.slane %v738, 4
        %v740 = vadd.f32 %v738, %v739
        %v741 = vrot.slane %v740, 2
        %v742 = vadd.f32 %v740, %v741
        %v743 = vrot.slane %v742, 1
        %v744 = vadd.f32 %v742, %v743
        %v745 = vld [vmem:[#allocation2] sm:$0x1]
        %747 = vset.pattern.permute.xlu0 0
        %748 = vperm.xlu0 %747, %v745
        %v749 = vpop.permute.xlu0 %748
        %v751 = vlaneseq
        %v752 = vshrl.u32 %v751, 7
        %v753 = vsub.s32 0, %v752
        %v754 = vrot.slane %v749, %v753
        %v755 = vadd.f32 %v735, %v754
        %v756 = vadd.f32 %v744, %v754
        %v757 = vxor.u32 %v755, 2147483648
        %v758 = vxor.u32 %v756, 2147483648
        %v759 = vmul.f32 %v757, 1.442695
        %v760 = vpow.pop %v759
        %v761 = vmul.f32 %v758, 1.442695
        %v762 = vpow.pop %v761
        %v763 = vadd.f32 %v760, 1.0
        %v764 = vadd.f32 %v762, 1.0
        %v765 = vrcp.pop %v763
        %v766 = vmul.f32 1.0, %v765
        %v767 = vrcp.pop %v764
        %v768 = vmul.f32 1.0, %v767
        %v771 = vcombine.low %v766, %v768
        %v773 = vunpack.c.l.s4 1966171168
        %v774 = vunpack.c.0.s8 %v773
        %v775 = vlaneseq
        %v776 = vshrl.u32 %v775, 7
        %v777 = vsub.s32 %v774, %v776
        %v778 = vrot.slane %v771, %v777
        %v780 = vunpack.c.l.s4 1966171168
        %v781 = vunpack.c.0.s8 %v780
        %v782 = vlaneseq
        %v783 = vshrl.u32 %v782, 7
        %v784 = vsub.s32 %v781, %v783
        %v785 = vrot.slane %v778, %v784
        %v787 = vlaneseq
        %vm788 = vcmp.ge.s32.totalorder %v787, 0
        %vm789 = vcmp.lt.s32.totalorder %v787, 256
        %vm790 = vmand %vm788, %vm789
        %791 = vst.msk [vmem:[%s286] sm:$0x3] %vm790, %v785
        %s792 = sand.u32 %s183, 1
        %s793 = scalar_lea.sflag [#allocation4], %s792
        %s794 = sand.u32 %s183, 1
        %s795 = smul.addr %s794, 2
        %s796 = scalar_lea.vmem [#allocation3], %s795
        // Predicated region
        $region49: #{heart_attack_classifier.1} parent=47 // pred_check
          %p797 = pneg %p193
        $region50: #{heart_attack_classifier.1} parent=47 // pred_check_branch
          %799 = sbr.rel (%p797) target = $region52
        $region51: #{heart_attack_classifier.1} parent=47 // pred_region
          %s800 = smul.u32 2, %s23
          %s801 = ssub.s32 3, %s800
          %p802 = scmp.lt.s32.totalorder %s801, 2
          %s803 = scalar_select %p802, %s801, 2
          %s804 = smul.u32 16, %s803
          %s806 = ssub.s32 32, %s804
          %807 = vsyncadd %s793, %s806
          %p808 = scmp.ne.s32.totalorder 0, %s804
          %s809 = smul.addr %s800, 16
          %s810 = scalar_lea.hbm %s7, %s809
          %s811 = sshll.u32 %s803, 4
          %s812 = sshll.u32 %s796, 4
          %s813 = int_to_ptr.vmem [resolvable:$true] %s812
          %815 = dma.vmem_to_hbm [thread:$0]  (%p808), %s813, %s811, %s810, %s793
        $region52: #{heart_attack_classifier.1} parent=47 // pred_fallthru
          _
      $region48: #{heart_attack_classifier.1} parent=5 // pred_fallthru
        _
      %p816 = scmp.le.s32.totalorder 2, %s18
      // Predicated region
      $region53: #{heart_attack_classifier.1} parent=5 // pred_check
        %p817 = pneg %p816
      $region54: #{heart_attack_classifier.1} parent=5 // pred_check_branch
        %819 = sbr.rel (%p817) target = $region56
      $region55: #{heart_attack_classifier.1} parent=5 // pred_region
        %s820 = ssub.s32 %s18, 2
        // Predicated region
        $region57: #{heart_attack_classifier.1} parent=55 // pred_check
          %p821 = pneg %p199
        $region58: #{heart_attack_classifier.1} parent=55 // pred_check_branch
          %823 = sbr.rel (%p821) target = $region60
        $region59: #{heart_attack_classifier.1} parent=55 // pred_region
          %s824 = sand.u32 %s184, 1
          %s825 = scalar_lea.sflag [#allocation4], %s824
          %s826 = sand.u32 %s184, 1
          %s827 = smul.addr %s826, 2
          %s828 = scalar_lea.vmem [#allocation3], %s827
          %829 = dma.done %s825, 32
        $region60: #{heart_attack_classifier.1} parent=55 // pred_fallthru
          _
      $region56: #{heart_attack_classifier.1} parent=5 // pred_fallthru
        _
    $region6: #{heart_attack_classifier.1} parent=1 // loop_footer
      %s22 = sadd.s32 1, %s18
    $region7: #{heart_attack_classifier.1} parent=1 // loop_footer_branch
      %17 = sbr.rel target = $region3
    $region8: #{heart_attack_classifier.1} parent=1 // loop_exit
      _
    %830 = vsyncpa [#allocation4], 1
    %s831 = scalar_lea.sflag [#allocation4], 1
    %832 = vsyncpa %s831, 1

</llo_original>
